<compile_context>
chip_gen: v7x
topology: tpu7x:2x2x1
jax: 0.10.0
libtpu: 0.0.40
codegen_flags: <defaults>
</compile_context>

<pallas_src>
import functools

import jax
import jax.numpy as jnp
from jax import lax
from jax.experimental import pallas as pl
from jax.experimental.pallas import tpu as pltpu

LANE = 128     # TPU lane width (last-dim vreg width)
SUBLANE = 8    # f32 sublane packing (second-to-last dim)


def _round_up(n: int, m: int) -> int:
    return ((n + m - 1) // m) * m


def _linear_kernel(x_ref, w_ref, o_ref):
    # x_ref: (TB, IN_P) padded inputs; w_ref: (OUT_P, IN_P) padded weight in
    # PyTorch [out, in] layout.  Contract last dim of x with last dim of w
    # (== x @ W^T) without any in-kernel transpose.
    o_ref[...] = lax.dot_general(
        x_ref[...],
        w_ref[...],
        dimension_numbers=(((1,), (1,)), ((), ())),
        preferred_element_type=jnp.float32,
    ).astype(o_ref.dtype)


@functools.partial(jax.jit, static_argnames=("block_batch",))
def simple_net_forward(x: jax.Array, weight: jax.Array, *, block_batch: int = 512) -> jax.Array:
    """Linear(5, 5, bias=False) forward: y = x @ W^T via a Pallas TPU kernel.

    x:      (batch, 5) float32
    weight: (5, 5)     float32  (PyTorch [out, in] convention; kept general)
    """
    batch, in_f = x.shape
    out_f, w_in = weight.shape
    assert w_in == in_f, "weight must be (out_features, in_features)"

    # Lane-dense padding: feature dims -> multiples of 128 lanes,
    # batch -> multiple of the batch tile (itself a multiple of 8 sublanes).
    in_p = _round_up(in_f, LANE)
    out_p = _round_up(out_f, LANE)
    tb = min(block_batch, _round_up(batch, SUBLANE))
    batch_p = _round_up(batch, tb)

    x_p = jnp.zeros((batch_p, in_p), x.dtype).at[:batch, :in_f].set(x)
    w_p = jnp.zeros((out_p, in_p), weight.dtype).at[:out_f, :in_f].set(weight)

    grid = (batch_p // tb,)

    y_p = pl.pallas_call(
        _linear_kernel,
        out_shape=jax.ShapeDtypeStruct((batch_p, out_p), x.dtype),
        grid=grid,
        in_specs=[
            # Batch-tiled activations.
            pl.BlockSpec((tb, in_p), lambda i: (i, 0)),
            # Weight block index is constant -> stays VMEM-resident across the grid.
            pl.BlockSpec((out_p, in_p), lambda i: (0, 0)),
        ],
        out_specs=pl.BlockSpec((tb, out_p), lambda i: (i, 0)),
        compiler_params=pltpu.CompilerParams(
            # Batch tiles are independent: let Mosaic shard them across
            # TensorCores on v7x; no-op on single-TC v5e/v6e.
            dimension_semantics=("parallel",),
        ),
        cost_estimate=pl.CostEstimate(
            flops=2 * batch * in_f * out_f,
            transcendentals=0,
            bytes_accessed=(batch_p * (in_p + out_p) + out_p * in_p) * 4,
        ),
    )(x_p, w_p)

    # Strip the zero padding back to the logical shape.
    return y_p[:batch, :out_f]


if __name__ == "__main__":
    key = jax.random.PRNGKey(0)
    batch = 8
    features = 5  # nn.Linear(5, 5)

    # Deterministic parameter init, matching SimpleNet.__init__: W = 2 * I(5).
    weight = 2.0 * jnp.eye(features, dtype=jnp.float32)

    x = jax.random.normal(key, (batch, features), dtype=jnp.float32)

    y = jax.block_until_ready(simple_net_forward(x, weight))

    # Semantics check: SimpleNet multiplies its input by 2 (y = x @ W^T).
    expected = x @ weight.T
    assert y.shape == (batch, features)
    assert jnp.allclose(y, expected, atol=1e-6), "mismatch vs reference"
    assert jnp.allclose(y, 2.0 * x, atol=1e-6), "mismatch vs 2*x"

    print("KERNEL_OK")
</pallas_src>

<mosaic_0001>
module attributes {stable_mosaic.version = 11 : i64} {
  func.func @_linear_kernel(%arg0: i32, %arg1: memref<8x128xf32, #tpu.memory_space<vmem>>, %arg2: memref<128x128xf32, #tpu.memory_space<vmem>>, %arg3: memref<8x128xf32, #tpu.memory_space<vmem>>) attributes {dimension_semantics = [#tpu.dimension_semantics<parallel>], iteration_bounds = array<i64: 1>, scalar_prefetch = 0 : i64, scratch_operands = 0 : i64, tpu.core_type = #tpu.core_type<tc>, window_params = [{transform_indices = @transform_0, window_bounds = array<i64: 8, 128>}, {pipeline_mode = #tpu.pipeline_mode<synchronous>, transform_indices = @transform_1, window_bounds = array<i64: 128, 128>}, {transform_indices = @transform_2, window_bounds = array<i64: 8, 128>}]} {
    %c0 = arith.constant 0 : index
    %c0_0 = arith.constant 0 : index
    %0 = vector.load %arg1[%c0, %c0_0] : memref<8x128xf32, #tpu.memory_space<vmem>>, vector<8x128xf32>
    %c0_1 = arith.constant 0 : index
    %c0_2 = arith.constant 0 : index
    %1 = vector.load %arg2[%c0_1, %c0_2] : memref<128x128xf32, #tpu.memory_space<vmem>>, vector<128x128xf32>
    %cst = arith.constant dense<0.000000e+00> : vector<8x128xf32>
    %2 = tpu.matmul %0, %1, %cst {dimension_numbers = #tpu.dot_dimension_numbers<[1], [1], [0], [0], [0, 0, 1, 0], [], []>} : vector<8x128xf32>, vector<128x128xf32>, vector<8x128xf32> -> vector<8x128xf32>
    %c0_3 = arith.constant 0 : index
    %c0_4 = arith.constant 0 : index
    %3 = vector.load %arg3[%c0_3, %c0_4] : memref<8x128xf32, #tpu.memory_space<vmem>>, vector<8x128xf32>
    tpu.vector_store %arg3[%c0_3, %c0_4], %2 {strides = array<i32>} : memref<8x128xf32, #tpu.memory_space<vmem>>, vector<8x128xf32>,
    return
  }
  func.func @transform_0(%arg0: i32) -> (i32, i32) {
    %c0_i32 = arith.constant 0 : i32
    %c0_i32_0 = arith.constant 0 : i32
    return %arg0, %c0_i32 : i32, i32
  }
  func.func @transform_1(%arg0: i32) -> (i32, i32) {
    %c0_i32 = arith.constant 0 : i32
    %c0_i32_0 = arith.constant 0 : i32
    %c0_i32_1 = arith.constant 0 : i32
    return %c0_i32, %c0_i32_0 : i32, i32
  }
  func.func @transform_2(%arg0: i32) -> (i32, i32) {
    %c0_i32 = arith.constant 0 : i32
    %c0_i32_0 = arith.constant 0 : i32
    return %arg0, %c0_i32 : i32, i32
  }
}

</mosaic_0001>

<llo_original>
// kernel: simple_net_forward.1
$region0: #{simple_net_forward.1}
  #allocation0 [shape = 'u32[]', space=smem, size = 0x4, offset = 0x4, fixed_abs, tag = 'smem constant byte address 0x4 - core index']
  #allocation1 [shape = 'u32[144,128]{1,0:T(1,128)}', space=vmem, size = 0x12000, scoped, tag = 'internal scratch']
  %s0 = inlined_call_operand.vmem [shape: f32[8,128], index: 0, kind: input, shape index: {}]
  %s1 = inlined_call_operand.vmem [shape: f32[128,128], index: 1, kind: input, shape index: {}]
  %s2 = inlined_call_operand.hbm [shape: f32[8,128], index: 2, kind: output, shape index: {}]
  %s3 = sld [smem:[#allocation0]]
  $region18: #{simple_net_forward.1} parent=0
    _
  %s5 = ssub.s32 1, %s3
  %s6 = scalar_select 0, %s5, %s3
  $region1: #{simple_net_forward.1} parent=0
    #allocation2 [shape = 'u8[4096]{0}', space=vmem, size = 0x1000, scoped, tag = 'output window, operand 0, single buffered']
    #allocation3 [shape = 's32[1]{0}', space=sflag, size = 0x4, scoped, tag = 'scoped memory for simple_net_forward.1']
    %7 = vsyncpa [#allocation3], 0
    // Predicated region
    $region2: #{simple_net_forward.1} parent=1 // pred_check
      _
    $region3: #{simple_net_forward.1} parent=1 // pred_check_branch
      %9 = sbr.rel (0) target = $region5
    $region4: #{simple_net_forward.1} parent=1 // pred_region
      _
    $region5: #{simple_net_forward.1} parent=1 // pred_fallthru
      _
    // Predicated region
    $region6: #{simple_net_forward.1} parent=1 // pred_check
      _
    $region7: #{simple_net_forward.1} parent=1 // pred_check_branch
      %11 = sbr.rel (0) target = $region9
    $region8: #{simple_net_forward.1} parent=1 // pred_region
      _
    $region9: #{simple_net_forward.1} parent=1 // pred_fallthru
      _
    %v12 = vld [vmem:[%s0] sm:$0xff]
    %v13 = vld [vmem:[%s1] sm:$0xff]
    %v14 = vld [vmem:[%s1 + $0x8] sm:$0xff]
    %v15 = vld [vmem:[%s1 + $0x10] sm:$0xff]
    %v16 = vld [vmem:[%s1 + $0x18] sm:$0xff]
    %v17 = vld [vmem:[%s1 + $0x20] sm:$0xff]
    %v18 = vld [vmem:[%s1 + $0x28] sm:$0xff]
    %v19 = vld [vmem:[%s1 + $0x30] sm:$0xff]
    %v20 = vld [vmem:[%s1 + $0x38] sm:$0xff]
    %v21 = vld [vmem:[%s1 + $0x40] sm:$0xff]
    %v22 = vld [vmem:[%s1 + $0x48] sm:$0xff]
    %v23 = vld [vmem:[%s1 + $0x50] sm:$0xff]
    %v24 = vld [vmem:[%s1 + $0x58] sm:$0xff]
    %v25 = vld [vmem:[%s1 + $0x60] sm:$0xff]
    %v26 = vld [vmem:[%s1 + $0x68] sm:$0xff]
    %v27 = vld [vmem:[%s1 + $0x70] sm:$0xff]
    %v28 = vld [vmem:[%s1 + $0x78] sm:$0xff]
    %29 = vmatprep.subr.mxu0 0.0
    %30 = vmatpush1.xpose.msra.mxu0 %v13
    %31 = vmatprep.subr.mxu0 0.0
    %32 = vmatpush1.xpose.msra.mxu0 %v14
    %33 = vmatprep.subr.mxu0 0.0
    %34 = vmatpush1.xpose.msra.mxu0 %v15
    %35 = vmatprep.subr.mxu0 0.0
    %36 = vmatpush1.xpose.msra.mxu0 %v16
    %37 = vmatprep.subr.mxu0 0.0
    %38 = vmatpush1.xpose.msra.mxu0 %v17
    %39 = vmatprep.subr.mxu0 0.0
    %40 = vmatpush1.xpose.msra.mxu0 %v18
    %41 = vmatprep.subr.mxu0 0.0
    %42 = vmatpush1.xpose.msra.mxu0 %v19
    %43 = vmatprep.subr.mxu0 0.0
    %44 = vmatpush1.xpose.msra.mxu0 %v20
    %45 = vmatprep.subr.mxu0 0.0
    %46 = vmatpush1.xpose.msra.mxu0 %v21
    %47 = vmatprep.subr.mxu0 0.0
    %48 = vmatpush1.xpose.msra.mxu0 %v22
    %49 = vmatprep.subr.mxu0 0.0
    %50 = vmatpush1.xpose.msra.mxu0 %v23
    %51 = vmatprep.subr.mxu0 0.0
    %52 = vmatpush1.xpose.msra.mxu0 %v24
    %53 = vmatprep.subr.mxu0 0.0
    %54 = vmatpush1.xpose.msra.mxu0 %v25
    %55 = vmatprep.subr.mxu0 0.0
    %56 = vmatpush1.xpose.msra.mxu0 %v26
    %57 = vmatprep.subr.mxu0 0.0
    %58 = vmatpush1.xpose.msra.mxu0 %v27
    %59 = vmatprep.subr.mxu0 0.0
    %60 = vmatpush1.xpose.msra.mxu0 %v28
    %61 = vmatprep.subr.mxu0 0.0
    %62 = vmatpush1.xpose.msra.mxu0 0.0
    %63 = vmatprep.subr.mxu0 0.0
    %64 = vmatpush1.xpose.msra.mxu0 0.0
    %65 = vmatprep.subr.mxu0 0.0
    %66 = vmatpush1.xpose.msra.mxu0 0.0
    %67 = vmatprep.subr.mxu0 0.0
    %68 = vmatpush1.xpose.msra.mxu0 0.0
    %69 = vmatprep.subr.mxu0 0.0
    %70 = vmatpush1.xpose.msra.mxu0 0.0
    %71 = vmatprep.subr.mxu0 0.0
    %72 = vmatpush1.xpose.msra.mxu0 0.0
    %73 = vmatprep.subr.mxu0 0.0
    %74 = vmatpush1.xpose.msra.mxu0 0.0
    %75 = vmatprep.subr.mxu0 0.0
    %76 = vmatpush1.xpose.msra.mxu0 0.0
    %77 = vmatprep.subr.mxu0 0.0
    %78 = vmatpush1.xpose.msra.mxu0 0.0
    %79 = vmatprep.subr.mxu0 0.0
    %80 = vmatpush1.xpose.msra.mxu0 0.0
    %81 = vmatprep.subr.mxu0 0.0
    %82 = vmatpush1.xpose.msra.mxu0 0.0
    %83 = vmatprep.subr.mxu0 0.0
    %84 = vmatpush1.xpose.msra.mxu0 0.0
    %85 = vmatprep.subr.mxu0 0.0
    %86 = vmatpush1.xpose.msra.mxu0 0.0
    %87 = vmatprep.subr.mxu0 0.0
    %88 = vmatpush1.xpose.msra.mxu0 0.0
    %89 = vmatprep.subr.mxu0 0.0
    %90 = vmatpush1.xpose.msra.mxu0 0.0
    %91 = vmatprep.subr.mxu0 0.0
    %92 = vmatpush1.xpose.msra.mxu0 0.0
    %93 = vmatprep.mubr.f32.mxu0 0.0
    %94 = vmatmul.mubr.f32.gmra.mrb[0].mxu0 %v12
    %v95 = vpop.f32.mrb[0].mxu0
    %v96 = vadd.f32 0.0, %v95
    %v97 = vpop.f32.mrb[0].mxu0
    %98 = vdwg.mxu0
    %99 = vst [vmem:[#allocation2] sm:$0xff] %v96
    // Predicated region
    $region10: #{simple_net_forward.1} parent=1 // pred_check
      _
    $region11: #{simple_net_forward.1} parent=1 // pred_check_branch
      %101 = sbr.rel (0) target = $region13
    $region12: #{simple_net_forward.1} parent=1 // pred_region
      %s103 = ssub.s32 128, 128
      %104 = vsyncadd [#allocation3], %s103
      %s106 = sshll.u32 [#allocation2], 4
      %s107 = int_to_ptr.vmem [resolvable:$true] %s106
      %109 = dma.vmem_to_hbm [thread:$0]  %s107, 128, %s2, [#allocation3]
    $region13: #{simple_net_forward.1} parent=1 // pred_fallthru
      _
    // Predicated region
    $region14: #{simple_net_forward.1} parent=1 // pred_check
      _
    $region15: #{simple_net_forward.1} parent=1 // pred_check_branch
      %111 = sbr.rel (0) target = $region17
    $region16: #{simple_net_forward.1} parent=1 // pred_region
      %112 = dma.done [#allocation3], 128
    $region17: #{simple_net_forward.1} parent=1 // pred_fallthru
      _
    %113 = vsyncpa [#allocation3], 1

</llo_original>
